<compile_context>
chip_gen: v7x
topology: tpu7x:2x2x1
jax: 0.10.0
libtpu: 0.0.40
codegen_flags: <defaults>
</compile_context>

<pallas_src>
import math

import jax
import jax.numpy as jnp
from jax.experimental import pallas as pl
from jax.experimental.pallas import tpu as pltpu


def _pos_emb_kernel(t_ref, wscaled_ref, phase_ref, e0_ref, o_ref):
    # t_ref:       (TM, 1)      f32  padded time values
    # wscaled_ref: (1, D_pad)   f32  [0, 2*pi*w, 2*pi*w, 0...]
    # phase_ref:   (1, D_pad)   f32  [0, 0*half, (pi/2)*half, 0...]
    # e0_ref:      (1, D_pad)   f32  one-hot column 0
    # o_ref:       (TM, D_pad)  f32  [x, sin(2*pi*x*w), cos(2*pi*x*w), pad...]
    t = t_ref[...]
    # sin(theta + pi/2) == cos(theta); lane 0 has w=phase=0 so sin term is 0
    # and the e0 FMA writes x into column 0. Pad lanes stay 0 (w=phase=e0=0).
    o_ref[...] = jnp.sin(t * wscaled_ref[...] + phase_ref[...]) + t * e0_ref[...]


def learned_sinusoidal_pos_emb(x, weights):
    """Pallas forward of LearnedSinusoidalPosEmb. x: (B,) or (B, 1)."""
    if x.ndim == 1:           # rearrange(x, 'b -> b 1')
        x = x[:, None]
    B = x.shape[0]
    half = weights.shape[0]
    d_out = 1 + 2 * half
    D_pad = -(-d_out // 128) * 128          # lane-dense output width

    # Row tiling: up to 1024 rows per block (multiple of 8), batch padded to a
    # whole number of blocks so every store is a full (TM, D_pad) tile.
    TM = min(1024, max(8, -(-B // 8) * 8))
    Bp = -(-B // TM) * TM
    grid = (Bp // TM,)

    t = jnp.zeros((Bp, 1), jnp.float32).at[:B, :].set(x.astype(jnp.float32))

    two_pi = 2.0 * math.pi
    w = weights.astype(jnp.float32).reshape(1, half) * two_pi
    wscaled = jnp.zeros((1, D_pad), jnp.float32)
    wscaled = wscaled.at[:, 1:1 + half].set(w)
    wscaled = wscaled.at[:, 1 + half:1 + 2 * half].set(w)
    phase = jnp.zeros((1, D_pad), jnp.float32).at[:, 1 + half:1 + 2 * half].set(
        math.pi / 2.0)
    e0 = jnp.zeros((1, D_pad), jnp.float32).at[:, 0].set(1.0)

    out = pl.pallas_call(
        _pos_emb_kernel,
        out_shape=jax.ShapeDtypeStruct((Bp, D_pad), jnp.float32),
        grid=grid,
        in_specs=[
            pl.BlockSpec((TM, 1), lambda i: (i, 0)),
            pl.BlockSpec((1, D_pad), lambda i: (0, 0)),
            pl.BlockSpec((1, D_pad), lambda i: (0, 0)),
            pl.BlockSpec((1, D_pad), lambda i: (0, 0)),
        ],
        out_specs=pl.BlockSpec((TM, D_pad), lambda i: (i, 0)),
        compiler_params=pltpu.CompilerParams(
            dimension_semantics=("parallel",)),
    )(t, wscaled, phase, e0)
    return out[:B, :d_out]


# jit the wrapper so pad/slice/constant-prep plumbing fuses around the kernel
pos_emb = jax.jit(learned_sinusoidal_pos_emb)


def ref_forward(x, weights):
    # Pure-JAX reference matching the PyTorch module semantics.
    if x.ndim == 1:
        x = x[:, None]
    x = x.astype(jnp.float32)
    freqs = x * weights[None, :] * 2.0 * math.pi
    return jnp.concatenate([x, jnp.sin(freqs), jnp.cos(freqs)], axis=-1)


if __name__ == "__main__":
    B, dim = 2, 32                 # dim must be even; half_dim = 16
    half = dim // 2

    key = jax.random.PRNGKey(0)
    kw, kt = jax.random.split(key)
    weights = jax.random.normal(kw, (half,), jnp.float32)   # nn.Parameter(torch.randn(half))
    times = jax.random.uniform(kt, (B,), jnp.float32)

    # ndim == 1 path
    out = jax.block_until_ready(pos_emb(times, weights))
    ref = ref_forward(times, weights)
    assert out.shape == (B, dim + 1), out.shape
    assert jnp.allclose(out, ref, atol=1e-5, rtol=1e-5), float(jnp.abs(out - ref).max())

    # ndim == 2 path
    out2 = jax.block_until_ready(pos_emb(times[:, None], weights))
    assert out2.shape == (B, dim + 1), out2.shape
    assert jnp.allclose(out2, ref, atol=1e-5, rtol=1e-5), float(jnp.abs(out2 - ref).max())

    # a batch that is not a multiple of 8 (exercises row padding / slicing)
    times3 = jax.random.uniform(jax.random.PRNGKey(1), (13,), jnp.float32)
    out3 = jax.block_until_ready(pos_emb(times3, weights))
    ref3 = ref_forward(times3, weights)
    assert out3.shape == (13, dim + 1), out3.shape
    assert jnp.allclose(out3, ref3, atol=1e-5, rtol=1e-5), float(jnp.abs(out3 - ref3).max())

    print("KERNEL_OK")
</pallas_src>

<mosaic_0001>
module attributes {stable_mosaic.version = 11 : i64} {
  func.func @_pos_emb_kernel(%arg0: i32, %arg1: memref<8x1xf32, #tpu.memory_space<vmem>>, %arg2: memref<1x128xf32, #tpu.memory_space<vmem>>, %arg3: memref<1x128xf32, #tpu.memory_space<vmem>>, %arg4: memref<1x128xf32, #tpu.memory_space<vmem>>, %arg5: memref<8x128xf32, #tpu.memory_space<vmem>>) attributes {dimension_semantics = [#tpu.dimension_semantics<parallel>], iteration_bounds = array<i64: 1>, scalar_prefetch = 0 : i64, scratch_operands = 0 : i64, tpu.core_type = #tpu.core_type<tc>, window_params = [{transform_indices = @transform_0, window_bounds = array<i64: 8, 1>}, {pipeline_mode = #tpu.pipeline_mode<synchronous>, transform_indices = @transform_1, window_bounds = array<i64: 1, 128>}, {pipeline_mode = #tpu.pipeline_mode<synchronous>, transform_indices = @transform_2, window_bounds = array<i64: 1, 128>}, {pipeline_mode = #tpu.pipeline_mode<synchronous>, transform_indices = @transform_3, window_bounds = array<i64: 1, 128>}, {transform_indices = @transform_4, window_bounds = array<i64: 8, 128>}]} {
    %c0 = arith.constant 0 : index
    %c0_0 = arith.constant 0 : index
    %0 = vector.load %arg1[%c0, %c0_0] : memref<8x1xf32, #tpu.memory_space<vmem>>, vector<8x1xf32>
    %c0_1 = arith.constant 0 : index
    %c0_2 = arith.constant 0 : index
    %1 = vector.load %arg2[%c0_1, %c0_2] : memref<1x128xf32, #tpu.memory_space<vmem>>, vector<1x128xf32>
    %2 = vector.broadcast %0 : vector<8x1xf32> to vector<8x128xf32>
    %3 = vector.broadcast %1 : vector<1x128xf32> to vector<8x128xf32>
    %4 = arith.mulf %2, %3 : vector<8x128xf32>
    %c0_3 = arith.constant 0 : index
    %c0_4 = arith.constant 0 : index
    %5 = vector.load %arg3[%c0_3, %c0_4] : memref<1x128xf32, #tpu.memory_space<vmem>>, vector<1x128xf32>
    %6 = vector.broadcast %5 : vector<1x128xf32> to vector<8x128xf32>
    %7 = arith.addf %4, %6 : vector<8x128xf32>
    %8 = math.sin %7 : vector<8x128xf32>
    %c0_5 = arith.constant 0 : index
    %c0_6 = arith.constant 0 : index
    %9 = vector.load %arg4[%c0_5, %c0_6] : memref<1x128xf32, #tpu.memory_space<vmem>>, vector<1x128xf32>
    %10 = vector.broadcast %0 : vector<8x1xf32> to vector<8x128xf32>
    %11 = vector.broadcast %9 : vector<1x128xf32> to vector<8x128xf32>
    %12 = arith.mulf %10, %11 : vector<8x128xf32>
    %13 = arith.addf %8, %12 : vector<8x128xf32>
    %c0_7 = arith.constant 0 : index
    %c0_8 = arith.constant 0 : index
    %14 = vector.load %arg5[%c0_7, %c0_8] : memref<8x128xf32, #tpu.memory_space<vmem>>, vector<8x128xf32>
    tpu.vector_store %arg5[%c0_7, %c0_8], %13 {strides = array<i32>} : memref<8x128xf32, #tpu.memory_space<vmem>>, vector<8x128xf32>,
    return
  }
  func.func @transform_0(%arg0: i32) -> (i32, i32) {
    %c0_i32 = arith.constant 0 : i32
    %c0_i32_0 = arith.constant 0 : i32
    return %arg0, %c0_i32 : i32, i32
  }
  func.func @transform_1(%arg0: i32) -> (i32, i32) {
    %c0_i32 = arith.constant 0 : i32
    %c0_i32_0 = arith.constant 0 : i32
    %c0_i32_1 = arith.constant 0 : i32
    return %c0_i32, %c0_i32_0 : i32, i32
  }
  func.func @transform_2(%arg0: i32) -> (i32, i32) {
    %c0_i32 = arith.constant 0 : i32
    %c0_i32_0 = arith.constant 0 : i32
    %c0_i32_1 = arith.constant 0 : i32
    return %c0_i32, %c0_i32_0 : i32, i32
  }
  func.func @transform_3(%arg0: i32) -> (i32, i32) {
    %c0_i32 = arith.constant 0 : i32
    %c0_i32_0 = arith.constant 0 : i32
    %c0_i32_1 = arith.constant 0 : i32
    return %c0_i32, %c0_i32_0 : i32, i32
  }
  func.func @transform_4(%arg0: i32) -> (i32, i32) {
    %c0_i32 = arith.constant 0 : i32
    %c0_i32_0 = arith.constant 0 : i32
    return %arg0, %c0_i32 : i32, i32
  }
}

</mosaic_0001>

<llo_original>
// kernel: learned_sinusoidal_pos_emb.1
$region0: #{learned_sinusoidal_pos_emb.1}
  #allocation0 [shape = 'u32[]', space=smem, size = 0x4, offset = 0x4, fixed_abs, tag = 'smem constant byte address 0x4 - core index']
  #allocation1 [shape = 'u32[144,128]{1,0:T(1,128)}', space=vmem, size = 0x12000, scoped, tag = 'internal scratch']
  %s0 = inlined_call_operand.vmem [shape: f32[8,1], index: 0, kind: input, shape index: {}]
  %s1 = inlined_call_operand.vmem [shape: f32[1,128], index: 1, kind: input, shape index: {}]
  %s2 = inlined_call_operand.vmem [shape: f32[1,128], index: 2, kind: input, shape index: {}]
  %s3 = inlined_call_operand.vmem [shape: f32[1,128], index: 3, kind: input, shape index: {}]
  %s4 = inlined_call_operand.vmem [shape: f32[8,128], index: 4, kind: output, shape index: {}]
  %s5 = sld [smem:[#allocation0]]
  $region26: #{learned_sinusoidal_pos_emb.1} parent=0
    _
  %s7 = ssub.s32 1, %s5
  %s8 = scalar_select 0, %s7, %s5
  // Predicated region
  $region2: #{learned_sinusoidal_pos_emb.1} parent=0 // pred_check
    _
  $region3: #{learned_sinusoidal_pos_emb.1} parent=0 // pred_check_branch
    %10 = sbr.rel (0) target = $region5
  $region4: #{learned_sinusoidal_pos_emb.1} parent=0 // pred_region
    _
  $region5: #{learned_sinusoidal_pos_emb.1} parent=0 // pred_fallthru
    _
  // Predicated region
  $region6: #{learned_sinusoidal_pos_emb.1} parent=0 // pred_check
    _
  $region7: #{learned_sinusoidal_pos_emb.1} parent=0 // pred_check_branch
    %12 = sbr.rel (0) target = $region9
  $region8: #{learned_sinusoidal_pos_emb.1} parent=0 // pred_region
    _
  $region9: #{learned_sinusoidal_pos_emb.1} parent=0 // pred_fallthru
    _
  // Predicated region
  $region10: #{learned_sinusoidal_pos_emb.1} parent=0 // pred_check
    _
  $region11: #{learned_sinusoidal_pos_emb.1} parent=0 // pred_check_branch
    %14 = sbr.rel (0) target = $region13
  $region12: #{learned_sinusoidal_pos_emb.1} parent=0 // pred_region
    _
  $region13: #{learned_sinusoidal_pos_emb.1} parent=0 // pred_fallthru
    _
  // Predicated region
  $region14: #{learned_sinusoidal_pos_emb.1} parent=0 // pred_check
    _
  $region15: #{learned_sinusoidal_pos_emb.1} parent=0 // pred_check_branch
    %16 = sbr.rel (0) target = $region17
  $region16: #{learned_sinusoidal_pos_emb.1} parent=0 // pred_region
    _
  $region17: #{learned_sinusoidal_pos_emb.1} parent=0 // pred_fallthru
    _
  %v17 = vld [vmem:[%s0] sm:$0xff]
  %v18 = vld [vmem:[%s1] sm:$0x1]
  %20 = vset.pattern.permute.xlu0 0
  %21 = vperm.xlu0 %20, %v17
  %v22 = vpop.permute.xlu0 %21
  %v25 = vlaneseq
  %v26 = vshrl.u32 %v25, 7
  %v27 = vsub.s32 0, %v26
  %v28 = vrot.slane %v18, %v27
  %v30 = vmul.f32 %v22, %v28
  %v31 = vld [vmem:[%s2] sm:$0x1]
  %v33 = vlaneseq
  %v34 = vshrl.u32 %v33, 7
  %v35 = vsub.s32 0, %v34
  %v36 = vrot.slane %v31, %v35
  %v38 = vadd.f32 %v30, %v36
  %v39 = vand.u32 2147483647, %v38
  %vm40 = vcmp.le.f32.partialorder %v39, 0.7853982
  %vm41 = vcmp.lt.s32.totalorder %v38, 0
  %v42 = vand.u32 %v38, 2139095040
  %v43 = vshrl.u32 %v42, 23
  %v44 = vsub.s32 %v43, 127
  %v45 = vand.u32 2147483647, %v38
  %v46 = vand.u32 %v45, 8388607
  %v47 = vor.u32 %v46, 8388608
  %v48 = vsub.s32 0, %v47
  %v49 = vadd.s32 %v44, 1
  %vm50 = vcmp.gt.s32.totalorder %v49, 0
  %v51 = vsel %vm50, %v49, 0
  %v52 = vshrl.u32 %v51, 5
  %v53 = vand.u32 %v51, 31
  %v54 = vsub.s32 32, %v53
  %v55 = vshrl.u32 683565275, %v54
  %v56 = vshll.u32 683565275, %v53
  %v57 = vshrl.u32 2475754826, %v54
  %v58 = vor.u32 %v56, %v57
  %v59 = vshll.u32 2475754826, %v53
  %v60 = vshrl.u32 2131351028, %v54
  %v61 = vor.u32 %v59, %v60
  %v62 = vshll.u32 2131351028, %v53
  %v63 = vshrl.u32 2102212464, %v54
  %v64 = vor.u32 %v62, %v63
  %v65 = vshll.u32 2102212464, %v53
  %v66 = vshrl.u32 920167782, %v54
  %v67 = vor.u32 %v65, %v66
  %v68 = vshll.u32 920167782, %v53
  %v69 = vshrl.u32 1326507024, %v54
  %v70 = vor.u32 %v68, %v69
  %vm71 = vcmp.lt.s32.totalorder %v52, 1
  %vm72 = vcmp.lt.s32.totalorder %v52, 2
  %vm73 = vcmp.lt.s32.totalorder %v52, 3
  %vm74 = vcmp.lt.s32.totalorder %v52, 4
  %v75 = vsel %vm71, %v55, %v58
  %v76 = vsel %vm74, %v64, 2102212464
  %v77 = vsel %vm73, %v61, %v76
  %v78 = vsel %vm72, %v75, %v77
  %v79 = vsel %vm71, %v58, %v61
  %v80 = vsel %vm74, %v67, 920167782
  %v81 = vsel %vm73, %v64, %v80
  %v82 = vsel %vm72, %v79, %v81
  %v83 = vsel %vm71, %v61, %v64
  %v84 = vsel %vm74, %v70, 1326507024
  %v85 = vsel %vm73, %v67, %v84
  %v86 = vsel %vm72, %v83, %v85
  %v87 = vshll.u32 %v47, 8
  %v88 = vmul.u32.u64.compose %v87, %v86
  %v89 = vextract.low.u32 %v88
  %v90 = vextract.high.u32 %v88
  %v91 = vmul.u32.u64.compose %v87, %v82
  %v92 = vextract.low.u32 %v91
  %v93 = vextract.high.u32 %v91
  %v94 = vmul.u32 %v87, %v78
  %v95 = vadd.s32 %v90, %v92
  %vm96 = vc.u32 %v90, %v92
  %v97 = vadd.s32 %v93, 1
  %v98 = vsel %vm96, %v97, %v93
  %v99 = vadd.s32 %v94, %v98
  %v100 = vadd.s32 %v99, 536870912
  %v101 = vshrl.u32 %v100, 30
  %v102 = vshll.u32 %v101, 30
  %v103 = vsub.s32 %v99, %v102
  %vm104 = vcmp.lt.s32.totalorder %v103, 0
  %v105 = vsub.s32 0, %v103
  %v106 = vsel %vm104, %v105, %v103
  %v107 = vclz %v106
  %v108 = vsub.s32 %v107, 2
  %vm109 = vcmp.gt.s32.totalorder 0, %v108
  %v110 = vsel %vm109, 0, %v108
  %v111 = vsub.s32 32, %v110
  %v112 = vshll.u32 %v103, %v110
  %v113 = vshrl.u32 %v95, %v111
  %v114 = vor.u32 %v112, %v113
  %v115 = vsub.s32 4294967266, %v110
  %v116 = vadd.s32 %v115, 127
  %v117 = vshll.u32 %v116, 23
  %v118 = vor.u32 4788187, %v117
  %v119 = vand.u32 2147483647, %v118
  %v121 = vcvt.s32.f32 %v114
  %v122 = vmul.f32 %v121, %v119
  %v123 = vxor.u32 %v122, 2147483648
  %v124 = vsel %vm41, %v123, %v122
  %v125 = vsub.s32 4, %v101
  %v126 = vsel %vm41, %v125, %v101
  %v127 = vsel %vm40, %v38, %v124
  %v128 = vsel %vm40, 0, %v126
  %v129 = vcosq.f32.pop %v127
  %v130 = vsinq.f32.pop %v127
  %vm131 = vweird.f32 %v38
  %v132 = vadd.s32 %v128, 3
  %v133 = vand.u32 %v132, 3
  %vm134 = vcmp.lt.s32.totalorder %v133, 2
  %vm135 = vcmp.eq.s32.totalorder %v133, 0
  %v136 = vxor.u32 %v130, 2147483648
  %v137 = vsel %vm135, %v129, %v136
  %vm138 = vcmp.eq.s32.totalorder %v133, 2
  %v139 = vxor.u32 %v129, 2147483648
  %v140 = vsel %vm138, %v139, %v130
  %v141 = vsel %vm134, %v137, %v140
  %v142 = vsel %vm131, nan, %v141
  %v143 = vld [vmem:[%s3] sm:$0x1]
  %v145 = vlaneseq
  %v146 = vshrl.u32 %v145, 7
  %v147 = vsub.s32 0, %v146
  %v148 = vrot.slane %v143, %v147
  %v150 = vmul.f32 %v22, %v148
  %v151 = vadd.f32 %v142, %v150
  %152 = vst [vmem:[%s4] sm:$0xff] %v151
  // Predicated region
  $region18: #{learned_sinusoidal_pos_emb.1} parent=0 // pred_check
    _
  $region19: #{learned_sinusoidal_pos_emb.1} parent=0 // pred_check_branch
    %154 = sbr.rel (0) target = $region21
  $region20: #{learned_sinusoidal_pos_emb.1} parent=0 // pred_region
    _
  $region21: #{learned_sinusoidal_pos_emb.1} parent=0 // pred_fallthru
    _
  // Predicated region
  $region22: #{learned_sinusoidal_pos_emb.1} parent=0 // pred_check
    _
  $region23: #{learned_sinusoidal_pos_emb.1} parent=0 // pred_check_branch
    %156 = sbr.rel (0) target = $region25
  $region24: #{learned_sinusoidal_pos_emb.1} parent=0 // pred_region
    _
  $region25: #{learned_sinusoidal_pos_emb.1} parent=0 // pred_fallthru
    _

</llo_original>
